<compile_context>
chip_gen: v5e
topology: v5e:2x2
jax: 0.10.0
libtpu: 0.0.40
codegen_flags: <defaults>
</compile_context>

<pallas_src>
import jax
import jax.numpy as jnp
from jax.experimental import pallas as pl
from jax.experimental.pallas import tpu as pltpu


def seqex_kernel(x_ref, w1_ref, b1_ref, w2_ref, b2_ref, o_ref):
    # x tile: (TM, H) in the input dtype (f32 here); weights: (H, H) bf16;
    # biases: (1, H) f32.
    x = x_ref[...]                       # single live copy, reused as residual
    b1 = b1_ref[...]                     # load biases once per tile
    b2 = b2_ref[...]

    x_mxu = x.astype(jnp.bfloat16)       # bf16 LHS for the MXU

    # layer 0: Linear(H, H)   (res.orig is set but unused by Linear)
    h = jnp.dot(x_mxu, w1_ref[...], preferred_element_type=jnp.float32) + b1
    # layer 1: ReLU (f32 on the VPU)
    h = jnp.maximum(h, 0.0)
    # layer 2: Linear(H, H)
    y = jnp.dot(h.astype(jnp.bfloat16), w2_ref[...],
                preferred_element_type=jnp.float32)
    # layer 3: MergeLayer -> res + res.orig  (res.orig == original input x);
    # b2 folded into the same VPU add.
    o_ref[...] = (y + b2 + x).astype(o_ref.dtype)


def _pick_tm(M, *, max_tm=512, min_grid=4):
    """Largest row tile: multiple of 8, divides M, <= max_tm, and (when M
    allows) keeps at least `min_grid` grid steps so both v7x TCs get work."""
    tm = min(max_tm, M)
    if M >= min_grid * 8 and M // tm < min_grid:
        tm = M // min_grid
    tm = max(8, (tm // 8) * 8)
    while M % tm:
        tm -= 8
    return tm


def sequential_ex(x, w1, b1, w2, b2, *, tm=None):
    """Fused SequentialEx(Linear, ReLU, Linear, MergeLayer) forward."""
    B, S, H = x.shape
    M = B * S
    if tm is None:
        tm = _pick_tm(M)
    assert M % tm == 0 and tm % 8 == 0
    xf = x.reshape(M, H)

    # Weights in bf16 for the MXU; biases stay f32 for the epilogue.
    w1b = w1.astype(jnp.bfloat16)
    w2b = w2.astype(jnp.bfloat16)
    b1f = b1.astype(jnp.float32)
    b2f = b2.astype(jnp.float32)

    itemsize = jnp.dtype(x.dtype).itemsize
    # VMEM footprint: double-buffered x / out tiles + resident bf16 weights.
    tile_bytes = 2 * (2 * tm * H * itemsize) + 2 * 2 * (H * H * 2 + H * 4)
    vmem_limit = int(min(max(4 * tile_bytes, 16 << 20), 64 << 20))

    cost = pl.CostEstimate(
        flops=4 * M * H * H,                       # two (M,H)x(H,H) matmuls
        transcendentals=0,
        bytes_accessed=2 * M * H * itemsize        # x in + out
        + 2 * H * H * 2                            # bf16 weights
        + 2 * H * 4,                               # f32 biases
    )

    out = pl.pallas_call(
        seqex_kernel,
        out_shape=jax.ShapeDtypeStruct((M, H), x.dtype),
        grid_spec=pltpu.PrefetchScalarGridSpec(
            num_scalar_prefetch=0,
            grid=(M // tm,),
            in_specs=[
                pl.BlockSpec((tm, H), lambda i: (i, 0)),   # x row tile
                pl.BlockSpec((H, H), lambda i: (0, 0)),    # W1 (bf16, resident)
                pl.BlockSpec((1, H), lambda i: (0, 0)),    # b1 (f32)
                pl.BlockSpec((H, H), lambda i: (0, 0)),    # W2 (bf16, resident)
                pl.BlockSpec((1, H), lambda i: (0, 0)),    # b2 (f32)
            ],
            out_specs=pl.BlockSpec((tm, H), lambda i: (i, 0)),
        ),
        compiler_params=pltpu.CompilerParams(
            dimension_semantics=("parallel",),
            vmem_limit_bytes=vmem_limit,
        ),
        cost_estimate=cost,
    )(xf, w1b, b1f, w2b, b2f)
    return out.reshape(B, S, H)


def reference_bf16(x, w1, b1, w2, b2):
    """Same math path as the kernel: bf16 MXU operands, f32 accumulation."""
    h = jnp.dot(x.astype(jnp.bfloat16), w1.astype(jnp.bfloat16),
                preferred_element_type=jnp.float32) + b1
    h = jnp.maximum(h, 0.0)
    y = jnp.dot(h.astype(jnp.bfloat16), w2.astype(jnp.bfloat16),
                preferred_element_type=jnp.float32)
    return y + b2 + x


def reference_f32(x, w1, b1, w2, b2):
    h = jnp.maximum(jnp.dot(x, w1) + b1, 0.0)
    return jnp.dot(h, w2) + b2 + x


if __name__ == "__main__":
    # M = B*S = 1024 rows -> tm = 256, grid of 4 steps (keeps both v7x TCs busy).
    B, S, H = 2, 512, 128
    key = jax.random.PRNGKey(0)
    kx, k1, kb1, k2, kb2 = jax.random.split(key, 5)

    x = jax.random.normal(kx, (B, S, H), dtype=jnp.float32)

    # deterministic nn.Linear-style init: U(-1/sqrt(H), 1/sqrt(H))
    lim = 1.0 / (H ** 0.5)
    w1 = jax.random.uniform(k1, (H, H), jnp.float32, -lim, lim)
    b1 = jax.random.uniform(kb1, (1, H), jnp.float32, -lim, lim)
    w2 = jax.random.uniform(k2, (H, H), jnp.float32, -lim, lim)
    b2 = jax.random.uniform(kb2, (1, H), jnp.float32, -lim, lim)

    out = sequential_ex(x, w1, b1, w2, b2)
    out = jax.block_until_ready(out)

    # Tight check against a reference that uses the same bf16-operand /
    # f32-accumulate math; loose check against the pure-f32 reference
    # (bf16 input rounding costs ~0.4% relative).
    ref_b = reference_bf16(x, w1, b1, w2, b2)
    ref_f = reference_f32(x, w1, b1, w2, b2)
    assert jnp.allclose(out, ref_b, atol=2e-3, rtol=2e-3), "mismatch vs bf16 reference"
    assert jnp.allclose(out, ref_f, atol=5e-2, rtol=5e-2), "mismatch vs f32 reference"

    # TODO(synk): SequentialEx's `.orig` attribute mutation on tensors has no
    # Pallas analogue; the original input is instead threaded explicitly
    # (here it is the residual added in the final merge step).
    # TODO(synk): for large hidden sizes (H >~ 2048) the resident (H,H) weights
    # need K/N tiling with a 3-D grid + f32 accumulator scratch to fit v7x's
    # 64 MiB VMEM; not needed at these shapes.
    print("KERNEL_OK")
</pallas_src>

<mosaic_0001>
module attributes {stable_mosaic.version = 11 : i64} {
  func.func @seqex_kernel(%arg0: i32, %arg1: memref<256x128xf32, #tpu.memory_space<vmem>>, %arg2: memref<128x128xbf16, #tpu.memory_space<vmem>>, %arg3: memref<1x128xf32, #tpu.memory_space<vmem>>, %arg4: memref<128x128xbf16, #tpu.memory_space<vmem>>, %arg5: memref<1x128xf32, #tpu.memory_space<vmem>>, %arg6: memref<256x128xf32, #tpu.memory_space<vmem>>) attributes {dimension_semantics = [#tpu.dimension_semantics<parallel>], iteration_bounds = array<i64: 4>, scalar_prefetch = 0 : i64, scratch_operands = 0 : i64, tpu.core_type = #tpu.core_type<tc>, window_params = [{transform_indices = @transform_0, window_bounds = array<i64: 256, 128>}, {pipeline_mode = #tpu.pipeline_mode<synchronous>, transform_indices = @transform_1, window_bounds = array<i64: 128, 128>}, {pipeline_mode = #tpu.pipeline_mode<synchronous>, transform_indices = @transform_2, window_bounds = array<i64: 1, 128>}, {pipeline_mode = #tpu.pipeline_mode<synchronous>, transform_indices = @transform_3, window_bounds = array<i64: 128, 128>}, {pipeline_mode = #tpu.pipeline_mode<synchronous>, transform_indices = @transform_4, window_bounds = array<i64: 1, 128>}, {transform_indices = @transform_5, window_bounds = array<i64: 256, 128>}]} {
    %c0 = arith.constant 0 : index
    %c0_0 = arith.constant 0 : index
    %0 = vector.load %arg1[%c0, %c0_0] : memref<256x128xf32, #tpu.memory_space<vmem>>, vector<256x128xf32>
    %c0_1 = arith.constant 0 : index
    %c0_2 = arith.constant 0 : index
    %1 = vector.load %arg3[%c0_1, %c0_2] : memref<1x128xf32, #tpu.memory_space<vmem>>, vector<1x128xf32>
    %c0_3 = arith.constant 0 : index
    %c0_4 = arith.constant 0 : index
    %2 = vector.load %arg5[%c0_3, %c0_4] : memref<1x128xf32, #tpu.memory_space<vmem>>, vector<1x128xf32>
    %3 = arith.truncf %0 : vector<256x128xf32> to vector<256x128xbf16>
    %c0_5 = arith.constant 0 : index
    %c0_6 = arith.constant 0 : index
    %4 = vector.load %arg2[%c0_5, %c0_6] : memref<128x128xbf16, #tpu.memory_space<vmem>>, vector<128x128xbf16>
    %cst = arith.constant dense<0.000000e+00> : vector<256x128xf32>
    %5 = tpu.matmul %3, %4, %cst {dimension_numbers = #tpu.dot_dimension_numbers<[1], [0], [0], [1], [0, 0, 1, 1], [], []>} : vector<256x128xbf16>, vector<128x128xbf16>, vector<256x128xf32> -> vector<256x128xf32>
    %6 = vector.broadcast %1 : vector<1x128xf32> to vector<256x128xf32>
    %7 = arith.addf %5, %6 : vector<256x128xf32>
    %cst_7 = arith.constant 0.000000e+00 : f32
    %8 = vector.broadcast %cst_7 : f32 to vector<256x128xf32>
    %9 = arith.maximumf %7, %8 : vector<256x128xf32>
    %10 = arith.truncf %9 : vector<256x128xf32> to vector<256x128xbf16>
    %c0_8 = arith.constant 0 : index
    %c0_9 = arith.constant 0 : index
    %11 = vector.load %arg4[%c0_8, %c0_9] : memref<128x128xbf16, #tpu.memory_space<vmem>>, vector<128x128xbf16>
    %cst_10 = arith.constant dense<0.000000e+00> : vector<256x128xf32>
    %12 = tpu.matmul %10, %11, %cst_10 {dimension_numbers = #tpu.dot_dimension_numbers<[1], [0], [0], [1], [0, 0, 1, 1], [], []>} : vector<256x128xbf16>, vector<128x128xbf16>, vector<256x128xf32> -> vector<256x128xf32>
    %13 = vector.broadcast %2 : vector<1x128xf32> to vector<256x128xf32>
    %14 = arith.addf %12, %13 : vector<256x128xf32>
    %15 = arith.addf %14, %0 : vector<256x128xf32>
    %c0_11 = arith.constant 0 : index
    %c0_12 = arith.constant 0 : index
    %16 = vector.load %arg6[%c0_11, %c0_12] : memref<256x128xf32, #tpu.memory_space<vmem>>, vector<256x128xf32>
    tpu.vector_store %arg6[%c0_11, %c0_12], %15 {strides = array<i32>} : memref<256x128xf32, #tpu.memory_space<vmem>>, vector<256x128xf32>,
    return
  }
  func.func @transform_0(%arg0: i32) -> (i32, i32) {
    %c0_i32 = arith.constant 0 : i32
    %c0_i32_0 = arith.constant 0 : i32
    return %arg0, %c0_i32 : i32, i32
  }
  func.func @transform_1(%arg0: i32) -> (i32, i32) {
    %c0_i32 = arith.constant 0 : i32
    %c0_i32_0 = arith.constant 0 : i32
    %c0_i32_1 = arith.constant 0 : i32
    return %c0_i32, %c0_i32_0 : i32, i32
  }
  func.func @transform_2(%arg0: i32) -> (i32, i32) {
    %c0_i32 = arith.constant 0 : i32
    %c0_i32_0 = arith.constant 0 : i32
    %c0_i32_1 = arith.constant 0 : i32
    return %c0_i32, %c0_i32_0 : i32, i32
  }
  func.func @transform_3(%arg0: i32) -> (i32, i32) {
    %c0_i32 = arith.constant 0 : i32
    %c0_i32_0 = arith.constant 0 : i32
    %c0_i32_1 = arith.constant 0 : i32
    return %c0_i32, %c0_i32_0 : i32, i32
  }
  func.func @transform_4(%arg0: i32) -> (i32, i32) {
    %c0_i32 = arith.constant 0 : i32
    %c0_i32_0 = arith.constant 0 : i32
    %c0_i32_1 = arith.constant 0 : i32
    return %c0_i32, %c0_i32_0 : i32, i32
  }
  func.func @transform_5(%arg0: i32) -> (i32, i32) {
    %c0_i32 = arith.constant 0 : i32
    %c0_i32_0 = arith.constant 0 : i32
    return %arg0, %c0_i32 : i32, i32
  }
}

</mosaic_0001>

<llo_original>
// kernel: tpu_custom_call.1
$region0: #{tpu_custom_call.1}
  #allocation0 [shape = 'u32[]', space=smem, size = 0x4, offset = 0x4, fixed_abs, tag = 'smem constant byte address 0x4 - core index']
  #allocation1 [shape = 'u32[72,128]{1,0:T(1,128)}', space=vmem, size = 0x9000, scoped, tag = 'internal scratch']
  %s0 = inlined_call_operand.hbm [shape: f32[1024,128], index: 0, kind: input, shape index: {}]
  %s1 = inlined_call_operand.hbm [shape: bf16[128,128], index: 1, kind: input, shape index: {}]
  %s2 = inlined_call_operand.vmem [shape: f32[1,128], index: 2, kind: input, shape index: {}]
  %s3 = inlined_call_operand.hbm [shape: bf16[128,128], index: 3, kind: input, shape index: {}]
  %s4 = inlined_call_operand.vmem [shape: f32[1,128], index: 4, kind: input, shape index: {}]
  %s5 = inlined_call_operand.hbm [shape: f32[1024,128], index: 5, kind: output, shape index: {}]
  %s6 = sld [smem:[#allocation0]]
  $region65: #{tpu_custom_call.1} parent=0
    _
  %s8 = ssub.s32 1, %s6
  %s9 = scalar_select 0, %s8, %s6
  $region1: #{tpu_custom_call.1} parent=0
    #allocation2 [shape = 'u8[262144]{0}', space=vmem, size = 0x40000, scoped, tag = 'input window, operand 0']
    #allocation3 [shape = 's32[2]{0}', space=sflag, size = 0x8, scoped, tag = 'scoped memory for tpu_custom_call.1']
    #allocation4 [shape = 's32[2]{0}', space=sflag, size = 0x8, scoped, tag = 'scoped memory for tpu_custom_call.1']
    #allocation5 [shape = 'u8[32768]{0}', space=vmem, size = 0x8000, scoped, tag = 'input window, operand 1, single buffered']
    #allocation6 [shape = 's32[1]{0}', space=sflag, size = 0x4, scoped, tag = 'scoped memory for tpu_custom_call.1']
    #allocation7 [shape = 'u8[32768]{0}', space=vmem, size = 0x8000, scoped, tag = 'input window, operand 3, single buffered']
    #allocation8 [shape = 'u8[262144]{0}', space=vmem, size = 0x40000, scoped, tag = 'output window, operand 0']
    %10 = vsyncpa [#allocation3], 0
    %s11 = scalar_lea.sflag [#allocation3], 1
    %12 = vsyncpa %s11, 0
    %13 = vsyncpa [#allocation6], 0
    %14 = vsyncpa [#allocation4], 0
    %s15 = scalar_lea.sflag [#allocation4], 1
    %16 = vsyncpa %s15, 0
    loop: start=0, step=1, limit=6
    $region2: #{tpu_custom_call.1} parent=1 // loop_pre_header
      _
    $region3: #{tpu_custom_call.1} parent=1 // loop_header
      %s18 = sphi 0, %s22
      %p19 = scmp.ge.s32.totalorder %s18, 6
      %s28 = sphi 0, %s30
      %s31 = sphi 0, %s28
      %s32 = sphi 0, %s31
      %s48 = sphi 0, %s32
      %s52 = sphi 0, %s52
      %s54 = sphi 0, %s52
      %s55 = sphi 0, %s54
      %s69 = sphi 0, %s55
      %s73 = sphi 0, %s73
      %s75 = sphi 0, %s73
      %s76 = sphi 0, %s75
      %s90 = sphi 0, %s76
      %s94 = sphi 0, %s94
      %s96 = sphi 0, %s94
      %s97 = sphi 0, %s96
      %s111 = sphi 0, %s97
      %s115 = sphi 0, %s115
      %s117 = sphi 0, %s115
      %s118 = sphi 0, %s117
      %s132 = sphi 0, %s118
      %s138 = sphi 0, %s140
      %s141 = sphi 0, %s138
      %s142 = sphi 0, %s141
      %s158 = sphi 0, %s142
    $region4: #{tpu_custom_call.1} parent=1 // loop_header_branch
      %21 = sbr.rel (%p19) target = $region8
    $region5: #{tpu_custom_call.1} parent=1 // loop_body
      %s23 = ssub.s32 %s18, 1
      %s24 = ssub.s32 %s18, 2
      %s25 = sadd.s32 %s18, 1
      %s26 = ssub.s32 %s18, %s25
      %p27 = scmp.eq.s32.totalorder %s26, 0
      %s29 = sadd.s32 %s28, 1
      %s30 = scalar_select %p27, %s28, %s29
      %p33 = pneg %p27
      %p34 = scmp.eq.s32.totalorder %s18, 3
      %p35 = por %p33, %p34
      %p36 = scmp.ne.s32.totalorder %s28, %s31
      %p37 = scmp.eq.s32.totalorder %s18, 0
      %p38 = por %p36, %p37
      %p39 = scmp.ne.s32.totalorder %s28, %s31
      %p40 = scmp.eq.s32.totalorder %s23, 3
      %p41 = por %p39, %p40
      %p42 = scmp.ne.s32.totalorder %s31, %s32
      %p43 = scmp.eq.s32.totalorder %s23, 0
      %p44 = por %p42, %p43
      %p45 = scmp.ne.s32.totalorder %s31, %s32
      %p46 = scmp.eq.s32.totalorder %s24, 3
      %p47 = por %p45, %p46
      %p49 = scmp.ne.s32.totalorder %s32, %s48
      %p50 = scmp.eq.s32.totalorder %s24, 0
      %p51 = por %p49, %p50
      %s53 = sadd.s32 %s52, 1
      %p56 = scmp.eq.s32.totalorder %s18, 3
      %p57 = scmp.ne.s32.totalorder %s52, %s54
      %p58 = scmp.eq.s32.totalorder %s18, 0
      %p59 = por %p57, %p58
      %p60 = scmp.ne.s32.totalorder %s52, %s54
      %p61 = scmp.eq.s32.totalorder %s23, 3
      %p62 = por %p60, %p61
      %p63 = scmp.ne.s32.totalorder %s54, %s55
      %p64 = scmp.eq.s32.totalorder %s23, 0
      %p65 = por %p63, %p64
      %p66 = scmp.ne.s32.totalorder %s54, %s55
      %p67 = scmp.eq.s32.totalorder %s24, 3
      %p68 = por %p66, %p67
      %p70 = scmp.ne.s32.totalorder %s55, %s69
      %p71 = scmp.eq.s32.totalorder %s24, 0
      %p72 = por %p70, %p71
      %s74 = sadd.s32 %s73, 1
      %p77 = scmp.eq.s32.totalorder %s18, 3
      %p78 = scmp.ne.s32.totalorder %s73, %s75
      %p79 = scmp.eq.s32.totalorder %s18, 0
      %p80 = por %p78, %p79
      %p81 = scmp.ne.s32.totalorder %s73, %s75
      %p82 = scmp.eq.s32.totalorder %s23, 3
      %p83 = por %p81, %p82
      %p84 = scmp.ne.s32.totalorder %s75, %s76
      %p85 = scmp.eq.s32.totalorder %s23, 0
      %p86 = por %p84, %p85
      %p87 = scmp.ne.s32.totalorder %s75, %s76
      %p88 = scmp.eq.s32.totalorder %s24, 3
      %p89 = por %p87, %p88
      %p91 = scmp.ne.s32.totalorder %s76, %s90
      %p92 = scmp.eq.s32.totalorder %s24, 0
      %p93 = por %p91, %p92
      %s95 = sadd.s32 %s94, 1
      %p98 = scmp.eq.s32.totalorder %s18, 3
      %p99 = scmp.ne.s32.totalorder %s94, %s96
      %p100 = scmp.eq.s32.totalorder %s18, 0
      %p101 = por %p99, %p100
      %p102 = scmp.ne.s32.totalorder %s94, %s96
      %p103 = scmp.eq.s32.totalorder %s23, 3
      %p104 = por %p102, %p103
      %p105 = scmp.ne.s32.totalorder %s96, %s97
      %p106 = scmp.eq.s32.totalorder %s23, 0
      %p107 = por %p105, %p106
      %p108 = scmp.ne.s32.totalorder %s96, %s97
      %p109 = scmp.eq.s32.totalorder %s24, 3
      %p110 = por %p108, %p109
      %p112 = scmp.ne.s32.totalorder %s97, %s111
      %p113 = scmp.eq.s32.totalorder %s24, 0
      %p114 = por %p112, %p113
      %s116 = sadd.s32 %s115, 1
      %p119 = scmp.eq.s32.totalorder %s18, 3
      %p120 = scmp.ne.s32.totalorder %s115, %s117
      %p121 = scmp.eq.s32.totalorder %s18, 0
      %p122 = por %p120, %p121
      %p123 = scmp.ne.s32.totalorder %s115, %s117
      %p124 = scmp.eq.s32.totalorder %s23, 3
      %p125 = por %p123, %p124
      %p126 = scmp.ne.s32.totalorder %s117, %s118
      %p127 = scmp.eq.s32.totalorder %s23, 0
      %p128 = por %p126, %p127
      %p129 = scmp.ne.s32.totalorder %s117, %s118
      %p130 = scmp.eq.s32.totalorder %s24, 3
      %p131 = por %p129, %p130
      %p133 = scmp.ne.s32.totalorder %s118, %s132
      %p134 = scmp.eq.s32.totalorder %s24, 0
      %p135 = por %p133, %p134
      %s136 = ssub.s32 %s18, %s25
      %p137 = scmp.eq.s32.totalorder %s136, 0
      %s139 = sadd.s32 %s138, 1
      %s140 = scalar_select %p137, %s138, %s139
      %p143 = pneg %p137
      %p144 = scmp.eq.s32.totalorder %s18, 3
      %p145 = por %p143, %p144
      %p146 = scmp.ne.s32.totalorder %s138, %s141
      %p147 = scmp.eq.s32.totalorder %s18, 0
      %p148 = por %p146, %p147
      %p149 = scmp.ne.s32.totalorder %s138, %s141
      %p150 = scmp.eq.s32.totalorder %s23, 3
      %p151 = por %p149, %p150
      %p152 = scmp.ne.s32.totalorder %s141, %s142
      %p153 = scmp.eq.s32.totalorder %s23, 0
      %p154 = por %p152, %p153
      %p155 = scmp.ne.s32.totalorder %s141, %s142
      %p156 = scmp.eq.s32.totalorder %s24, 3
      %p157 = por %p155, %p156
      %p159 = scmp.ne.s32.totalorder %s142, %s158
      %p160 = scmp.eq.s32.totalorder %s24, 0
      %p161 = por %p159, %p160
      %p162 = scmp.le.s32.totalorder 1, %s18
      %p163 = scmp.lt.s32.totalorder %s18, 5
      %p164 = pnand %p162, %p163
      %p165 = pneg %p164
      // Predicated region
      $region9: #{tpu_custom_call.1} parent=5 // pred_check
        _
      $region10: #{tpu_custom_call.1} parent=5 // pred_check_branch
        %167 = sbr.rel (%p164) target = $region12
      $region11: #{tpu_custom_call.1} parent=5 // pred_region
        %s168 = ssub.s32 %s18, 1
        // Predicated region
        $region13: #{tpu_custom_call.1} parent=11 // pred_check
          %p169 = pneg %p65
        $region14: #{tpu_custom_call.1} parent=11 // pred_check_branch
          %171 = sbr.rel (%p169) target = $region16
        $region15: #{tpu_custom_call.1} parent=11 // pred_region
          %173 = vsyncadd [#allocation6], 0
          %s174 = sshll.u32 %s1, 4
          %s175 = int_to_ptr.hbm [resolvable:$true] %s174
          %s176 = sshll.u32 [#allocation5], 4
          %s177 = int_to_ptr.vmem [resolvable:$true] %s176
          %182 = dma.hbm_to_vmem [thread:$0]  %s175, 1024, %s177, [#allocation6], 64, 64, 4
        $region16: #{tpu_custom_call.1} parent=11 // pred_fallthru
          _
        // Predicated region
        $region17: #{tpu_custom_call.1} parent=11 // pred_check
          %p183 = pneg %p86
        $region18: #{tpu_custom_call.1} parent=11 // pred_check_branch
          %185 = sbr.rel (%p183) target = $region20
        $region19: #{tpu_custom_call.1} parent=11 // pred_region
          _
        $region20: #{tpu_custom_call.1} parent=11 // pred_fallthru
          _
        // Predicated region
        $region21: #{tpu_custom_call.1} parent=11 // pred_check
          %p186 = pneg %p107
        $region22: #{tpu_custom_call.1} parent=11 // pred_check_branch
          %188 = sbr.rel (%p186) target = $region24
        $region23: #{tpu_custom_call.1} parent=11 // pred_region
          %190 = vsyncadd [#allocation6], 0
          %s191 = sshll.u32 %s3, 4
          %s192 = int_to_ptr.hbm [resolvable:$true] %s191
          %s193 = sshll.u32 [#allocation7], 4
          %s194 = int_to_ptr.vmem [resolvable:$true] %s193
          %199 = dma.hbm_to_vmem [thread:$0]  %s192, 1024, %s194, [#allocation6], 64, 64, 4
        $region24: #{tpu_custom_call.1} parent=11 // pred_fallthru
          _
        // Predicated region
        $region25: #{tpu_custom_call.1} parent=11 // pred_check
          %p200 = pneg %p128
        $region26: #{tpu_custom_call.1} parent=11 // pred_check_branch
          %202 = sbr.rel (%p200) target = $region28
        $region27: #{tpu_custom_call.1} parent=11 // pred_region
          _
        $region28: #{tpu_custom_call.1} parent=11 // pred_fallthru
          _
      $region12: #{tpu_custom_call.1} parent=5 // pred_fallthru
        _
      %p203 = scmp.lt.s32.totalorder %s18, 4
      // Predicated region
      $region29: #{tpu_custom_call.1} parent=5 // pred_check
        %p204 = pneg %p203
      $region30: #{tpu_custom_call.1} parent=5 // pred_check_branch
        %206 = sbr.rel (%p204) target = $region32
      $region31: #{tpu_custom_call.1} parent=5 // pred_region
        // Predicated region
        $region33: #{tpu_custom_call.1} parent=31 // pred_check
          %p207 = pneg %p38
        $region34: #{tpu_custom_call.1} parent=31 // pred_check_branch
          %209 = sbr.rel (%p207) target = $region36
        $region35: #{tpu_custom_call.1} parent=31 // pred_region
          %s210 = sand.u32 %s28, 1
          %s211 = scalar_lea.sflag [#allocation3], %s210
          %s212 = sand.u32 %s28, 1
          %s213 = smul.addr %s212, 256
          %s214 = scalar_lea.vmem [#allocation2], %s213
          %s215 = smul.u32 32, %s18
          %217 = vsyncadd %s211, 0
          %s218 = smul.addr %s215, 8
          %s219 = scalar_lea.hbm %s0, %s218
          %s220 = sshll.u32 %s219, 4
          %s221 = int_to_ptr.hbm [resolvable:$true] %s220
          %s222 = sshll.u32 %s214, 4
          %s223 = int_to_ptr.vmem [resolvable:$true] %s222
          %228 = dma.hbm_to_vmem [thread:$0]  %s221, 4096, %s223, %s211, 128, 128, 8
        $region36: #{tpu_custom_call.1} parent=31 // pred_fallthru
          _
      $region32: #{tpu_custom_call.1} parent=5 // pred_fallthru
        _
      %p229 = scmp.le.s32.totalorder 1, %s18
      %p230 = scmp.lt.s32.totalorder %s18, 5
      %p231 = pnand %p229, %p230
      %p232 = pneg %p231
      // Predicated region
      $region37: #{tpu_custom_call.1} parent=5 // pred_check
        _
      $region38: #{tpu_custom_call.1} parent=5 // pred_check_branch
        %234 = sbr.rel (%p231) target = $region40
      $region39: #{tpu_custom_call.1} parent=5 // pred_region
        %s235 = ssub.s32 %s18, 1
        %s236 = sand.u32 %s31, 1
        %s237 = scalar_lea.sflag [#allocation3], %s236
        %s238 = sand.u32 %s31, 1
        %s239 = smul.addr %s238, 256
        %s240 = scalar_lea.vmem [#allocation2], %s239
        // Predicated region
        $region41: #{tpu_custom_call.1} parent=39 // pred_check
          %p241 = pneg %p44
        $region42: #{tpu_custom_call.1} parent=39 // pred_check_branch
          %243 = sbr.rel (%p241) target = $region44
        $region43: #{tpu_custom_call.1} parent=39 // pred_region
          %245 = dma.done %s237, 4096
        $region44: #{tpu_custom_call.1} parent=39 // pred_fallthru
          _
        // Predicated region
        $region45: #{tpu_custom_call.1} parent=39 // pred_check
          %p246 = pneg %p65
        $region46: #{tpu_custom_call.1} parent=39 // pred_check_branch
          %248 = sbr.rel (%p246) target = $region48
        $region47: #{tpu_custom_call.1} parent=39 // pred_region
          %250 = dma.done [#allocation6], 1024
        $region48: #{tpu_custom_call.1} parent=39 // pred_fallthru
          _
        // Predicated region
        $region49: #{tpu_custom_call.1} parent=39 // pred_check
          %p251 = pneg %p107
        $region50: #{tpu_custom_call.1} parent=39 // pred_check_branch
          %253 = sbr.rel (%p251) target = $region52
        $region51: #{tpu_custom_call.1} parent=39 // pred_region
          %255 = dma.done [#allocation6], 1024
        $region52: #{tpu_custom_call.1} parent=39 // pred_fallthru
          _
        %s256 = sand.u32 %s31, 1
        %s257 = scalar_lea.sflag [#allocation3], %s256
        %s258 = sand.u32 %s31, 1
        %s259 = smul.addr %s258, 256
        %s260 = scalar_lea.vmem [#allocation2], %s259
        %p261 = pneg %p44
        %p262 = pneg %p41
        %p263 = pneg %p65
        %p264 = pneg %p62
        %p265 = pneg %p86
        %p266 = pneg %p83
        %p267 = pneg %p107
        %p268 = pneg %p104
        %p269 = pneg %p128
        %p270 = pneg %p125
        %p271 = pneg %p154
        %p272 = pneg %p151
        %s273 = sand.u32 %s141, 1
        %s274 = scalar_lea.sflag [#allocation4], %s273
        %s275 = sand.u32 %s141, 1
        %s276 = smul.addr %s275, 256
        %s277 = scalar_lea.vmem [#allocation8], %s276
        %s278 = smul.u32 32, %s23
        %s279 = smul.u32 32, %s23
        %v280 = vld [vmem:[%s240] sm:$0xff]
        %v281 = vld [vmem:[%s240 + $0x8] sm:$0xff]
        %v282 = vld [vmem:[%s240 + $0x10] sm:$0xff]
        %v283 = vld [vmem:[%s240 + $0x18] sm:$0xff]
        %v284 = vld [vmem:[%s240 + $0x20] sm:$0xff]
        %v285 = vld [vmem:[%s240 + $0x28] sm:$0xff]
        %v286 = vld [vmem:[%s240 + $0x30] sm:$0xff]
        %v287 = vld [vmem:[%s240 + $0x38] sm:$0xff]
        %v288 = vld [vmem:[%s240 + $0x40] sm:$0xff]
        %v289 = vld [vmem:[%s240 + $0x48] sm:$0xff]
        %v290 = vld [vmem:[%s240 + $0x50] sm:$0xff]
        %v291 = vld [vmem:[%s240 + $0x58] sm:$0xff]
        %v292 = vld [vmem:[%s240 + $0x60] sm:$0xff]
        %v293 = vld [vmem:[%s240 + $0x68] sm:$0xff]
        %v294 = vld [vmem:[%s240 + $0x70] sm:$0xff]
        %v295 = vld [vmem:[%s240 + $0x78] sm:$0xff]
        %v296 = vld [vmem:[%s240 + $0x80] sm:$0xff]
        %v297 = vld [vmem:[%s240 + $0x88] sm:$0xff]
        %v298 = vld [vmem:[%s240 + $0x90] sm:$0xff]
        %v299 = vld [vmem:[%s240 + $0x98] sm:$0xff]
        %v300 = vld [vmem:[%s240 + $0xa0] sm:$0xff]
        %v301 = vld [vmem:[%s240 + $0xa8] sm:$0xff]
        %v302 = vld [vmem:[%s240 + $0xb0] sm:$0xff]
        %v303 = vld [vmem:[%s240 + $0xb8] sm:$0xff]
        %v304 = vld [vmem:[%s240 + $0xc0] sm:$0xff]
        %v305 = vld [vmem:[%s240 + $0xc8] sm:$0xff]
        %v306 = vld [vmem:[%s240 + $0xd0] sm:$0xff]
        %v307 = vld [vmem:[%s240 + $0xd8] sm:$0xff]
        %v308 = vld [vmem:[%s240 + $0xe0] sm:$0xff]
        %v309 = vld [vmem:[%s240 + $0xe8] sm:$0xff]
        %v310 = vld [vmem:[%s240 + $0xf0] sm:$0xff]
        %v311 = vld [vmem:[%s240 + $0xf8] sm:$0xff]
        %v312 = vld [vmem:[%s2] sm:$0x1]
        %v313 = vld [vmem:[%s4] sm:$0x1]
        %v314 = vpack.c.bf16 %v281, %v280
        %v315 = vpack.c.bf16 %v283, %v282
        %v316 = vpack.c.bf16 %v285, %v284
        %v317 = vpack.c.bf16 %v287, %v286
        %v318 = vpack.c.bf16 %v289, %v288
        %v319 = vpack.c.bf16 %v291, %v290
        %v320 = vpack.c.bf16 %v293, %v292
        %v321 = vpack.c.bf16 %v295, %v294
        %v322 = vpack.c.bf16 %v297, %v296
        %v323 = vpack.c.bf16 %v299, %v298
        %v324 = vpack.c.bf16 %v301, %v300
        %v325 = vpack.c.bf16 %v303, %v302
        %v326 = vpack.c.bf16 %v305, %v304
        %v327 = vpack.c.bf16 %v307, %v306
        %v328 = vpack.c.bf16 %v309, %v308
        %v329 = vpack.c.bf16 %v311, %v310
        %v330 = vld [vmem:[#allocation5] sm:$0xf]
        %v331 = vld [vmem:[#allocation5 + $0x4] sm:$0xf]
        %v332 = vld [vmem:[#allocation5 + $0x8] sm:$0xf]
        %v333 = vld [vmem:[#allocation5 + $0xc] sm:$0xf]
        %v334 = vld [vmem:[#allocation5 + $0x10] sm:$0xf]
        %v335 = vld [vmem:[#allocation5 + $0x14] sm:$0xf]
        %v336 = vld [vmem:[#allocation5 + $0x18] sm:$0xf]
        %v337 = vld [vmem:[#allocation5 + $0x1c] sm:$0xf]
        %v338 = vld [vmem:[#allocation5 + $0x20] sm:$0xf]
        %v339 = vld [vmem:[#allocation5 + $0x24] sm:$0xf]
        %v340 = vld [vmem:[#allocation5 + $0x28] sm:$0xf]
        %v341 = vld [vmem:[#allocation5 + $0x2c] sm:$0xf]
        %v342 = vld [vmem:[#allocation5 + $0x30] sm:$0xf]
        %v343 = vld [vmem:[#allocation5 + $0x34] sm:$0xf]
        %v344 = vld [vmem:[#allocation5 + $0x38] sm:$0xf]
        %v345 = vld [vmem:[#allocation5 + $0x3c] sm:$0xf]
        %v347 = vperm.slane %v312, 0
        %v365 = vunpack.c.l.b16 %v330
        %v366 = vunpack.c.l.b16 %v331
        %v367 = vunpack.c.l.b16 %v332
        %v368 = vunpack.c.l.b16 %v333
        %v369 = vunpack.c.l.b16 %v334
        %v370 = vunpack.c.l.b16 %v335
        %v371 = vunpack.c.l.b16 %v336
        %v372 = vunpack.c.l.b16 %v337
        %v373 = vunpack.c.l.b16 %v338
        %v374 = vunpack.c.l.b16 %v339
        %v375 = vunpack.c.l.b16 %v340
        %v376 = vunpack.c.l.b16 %v341
        %v377 = vunpack.c.l.b16 %v342
        %v378 = vunpack.c.l.b16 %v343
        %v379 = vunpack.c.l.b16 %v344
        %v380 = vunpack.c.l.b16 %v345
        %v381 = vpack.c.b16 %v366, %v365
        %v382 = vpack.c.b16 %v368, %v367
        %v383 = vpack.c.b16 %v370, %v369
        %v384 = vpack.c.b16 %v372, %v371
        %v385 = vpack.c.b16 %v374, %v373
        %v386 = vpack.c.b16 %v376, %v375
        %v387 = vpack.c.b16 %v378, %v377
        %v388 = vpack.c.b16 %v380, %v379
        %397 = vmatpush.bf16.msra.mxu0 %v388
        %398 = vmatpush.bf16.msra.mxu0 %v387
        %399 = vmatpush.bf16.msra.mxu0 %v386
        %400 = vmatpush.bf16.msra.mxu0 %v385
        %401 = vmatpush.bf16.msra.mxu0 %v384
        %402 = vmatpush.bf16.msra.mxu0 %v383
        %403 = vmatpush.bf16.msra.mxu0 %v382
        %404 = vmatpush.bf16.msra.mxu0 %v381
        %405 = vmatmul.bf16.gmra.mxu0 %v314
        %v406 = vpop.f32.mrf.mxu0
        %v407 = vadd.f32 %v347, %v406
        %v408 = vpop.f32.mrf.mxu0
        %v409 = vadd.f32 %v347, %v408
        %410 = vmatmul.bf16.gmra.mxu0 %v315
        %v411 = vpop.f32.mrf.mxu0
        %v412 = vadd.f32 %v347, %v411
        %v413 = vpop.f32.mrf.mxu0
        %v414 = vadd.f32 %v347, %v413
        %415 = vmatmul.bf16.gmra.mxu0 %v316
        %v416 = vpop.f32.mrf.mxu0
        %v417 = vadd.f32 %v347, %v416
        %v418 = vpop.f32.mrf.mxu0
        %v419 = vadd.f32 %v347, %v418
        %420 = vmatmul.bf16.gmra.mxu0 %v317
        %v421 = vpop.f32.mrf.mxu0
        %v422 = vadd.f32 %v347, %v421
        %v423 = vpop.f32.mrf.mxu0
        %v424 = vadd.f32 %v347, %v423
        %425 = vmatmul.bf16.gmra.mxu0 %v318
        %v426 = vpop.f32.mrf.mxu0
        %v427 = vadd.f32 %v347, %v426
        %v428 = vpop.f32.mrf.mxu0
        %v429 = vadd.f32 %v347, %v428
        %430 = vmatmul.bf16.gmra.mxu0 %v319
        %v431 = vpop.f32.mrf.mxu0
        %v432 = vadd.f32 %v347, %v431
        %v433 = vpop.f32.mrf.mxu0
        %v434 = vadd.f32 %v347, %v433
        %435 = vmatmul.bf16.gmra.mxu0 %v320
        %v436 = vpop.f32.mrf.mxu0
        %v437 = vadd.f32 %v347, %v436
        %v438 = vpop.f32.mrf.mxu0
        %v439 = vadd.f32 %v347, %v438
        %440 = vmatmul.bf16.gmra.mxu0 %v321
        %v441 = vpop.f32.mrf.mxu0
        %v442 = vadd.f32 %v347, %v441
        %v443 = vpop.f32.mrf.mxu0
        %v444 = vadd.f32 %v347, %v443
        %445 = vmatmul.bf16.gmra.mxu0 %v322
        %v446 = vpop.f32.mrf.mxu0
        %v447 = vadd.f32 %v347, %v446
        %v448 = vpop.f32.mrf.mxu0
        %v449 = vadd.f32 %v347, %v448
        %450 = vmatmul.bf16.gmra.mxu0 %v323
        %v451 = vpop.f32.mrf.mxu0
        %v452 = vadd.f32 %v347, %v451
        %v453 = vpop.f32.mrf.mxu0
        %v454 = vadd.f32 %v347, %v453
        %455 = vmatmul.bf16.gmra.mxu0 %v324
        %v456 = vpop.f32.mrf.mxu0
        %v457 = vadd.f32 %v347, %v456
        %v458 = vpop.f32.mrf.mxu0
        %v459 = vadd.f32 %v347, %v458
        %460 = vmatmul.bf16.gmra.mxu0 %v325
        %v461 = vpop.f32.mrf.mxu0
        %v462 = vadd.f32 %v347, %v461
        %v463 = vpop.f32.mrf.mxu0
        %v464 = vadd.f32 %v347, %v463
        %465 = vmatmul.bf16.gmra.mxu0 %v326
        %v466 = vpop.f32.mrf.mxu0
        %v467 = vadd.f32 %v347, %v466
        %v468 = vpop.f32.mrf.mxu0
        %v469 = vadd.f32 %v347, %v468
        %470 = vmatmul.bf16.gmra.mxu0 %v327
        %v471 = vpop.f32.mrf.mxu0
        %v472 = vadd.f32 %v347, %v471
        %v473 = vpop.f32.mrf.mxu0
        %v474 = vadd.f32 %v347, %v473
        %475 = vmatmul.bf16.gmra.mxu0 %v328
        %v476 = vpop.f32.mrf.mxu0
        %v477 = vadd.f32 %v347, %v476
        %v478 = vpop.f32.mrf.mxu0
        %v479 = vadd.f32 %v347, %v478
        %480 = vmatmul.bf16.gmra.mxu0 %v329
        %v481 = vpop.f32.mrf.mxu0
        %v482 = vadd.f32 %v347, %v481
        %v483 = vpop.f32.mrf.mxu0
        %v484 = vadd.f32 %v347, %v483
        %485 = vdwg.mxu0
        %v486 = vmax.f32 %v407, 0.0
        %v487 = vmax.f32 %v409, 0.0
        %v488 = vmax.f32 %v412, 0.0
        %v489 = vmax.f32 %v414, 0.0
        %v490 = vmax.f32 %v417, 0.0
        %v491 = vmax.f32 %v419, 0.0
        %v492 = vmax.f32 %v422, 0.0
        %v493 = vmax.f32 %v424, 0.0
        %v494 = vmax.f32 %v427, 0.0
        %v495 = vmax.f32 %v429, 0.0
        %v496 = vmax.f32 %v432, 0.0
        %v497 = vmax.f32 %v434, 0.0
        %v498 = vmax.f32 %v437, 0.0
        %v499 = vmax.f32 %v439, 0.0
        %v500 = vmax.f32 %v442, 0.0
        %v501 = vmax.f32 %v444, 0.0
        %v502 = vmax.f32 %v447, 0.0
        %v503 = vmax.f32 %v449, 0.0
        %v504 = vmax.f32 %v452, 0.0
        %v505 = vmax.f32 %v454, 0.0
        %v506 = vmax.f32 %v457, 0.0
        %v507 = vmax.f32 %v459, 0.0
        %v508 = vmax.f32 %v462, 0.0
        %v509 = vmax.f32 %v464, 0.0
        %v510 = vmax.f32 %v467, 0.0
        %v511 = vmax.f32 %v469, 0.0
        %v512 = vmax.f32 %v472, 0.0
        %v513 = vmax.f32 %v474, 0.0
        %v514 = vmax.f32 %v477, 0.0
        %v515 = vmax.f32 %v479, 0.0
        %v516 = vmax.f32 %v482, 0.0
        %v517 = vmax.f32 %v484, 0.0
        %v518 = vpack.c.bf16 %v487, %v486
        %v519 = vpack.c.bf16 %v489, %v488
        %v520 = vpack.c.bf16 %v491, %v490
        %v521 = vpack.c.bf16 %v493, %v492
        %v522 = vpack.c.bf16 %v495, %v494
        %v523 = vpack.c.bf16 %v497, %v496
        %v524 = vpack.c.bf16 %v499, %v498
        %v525 = vpack.c.bf16 %v501, %v500
        %v526 = vpack.c.bf16 %v503, %v502
        %v527 = vpack.c.bf16 %v505, %v504
        %v528 = vpack.c.bf16 %v507, %v506
        %v529 = vpack.c.bf16 %v509, %v508
        %v530 = vpack.c.bf16 %v511, %v510
        %v531 = vpack.c.bf16 %v513, %v512
        %v532 = vpack.c.bf16 %v515, %v514
        %v533 = vpack.c.bf16 %v517, %v516
        %v534 = vld [vmem:[#allocation7] sm:$0xf]
        %v535 = vld [vmem:[#allocation7 + $0x4] sm:$0xf]
        %v536 = vld [vmem:[#allocation7 + $0x8] sm:$0xf]
        %v537 = vld [vmem:[#allocation7 + $0xc] sm:$0xf]
        %v538 = vld [vmem:[#allocation7 + $0x10] sm:$0xf]
        %v539 = vld [vmem:[#allocation7 + $0x14] sm:$0xf]
        %v540 = vld [vmem:[#allocation7 + $0x18] sm:$0xf]
        %v541 = vld [vmem:[#allocation7 + $0x1c] sm:$0xf]
        %v542 = vld [vmem:[#allocation7 + $0x20] sm:$0xf]
        %v543 = vld [vmem:[#allocation7 + $0x24] sm:$0xf]
        %v544 = vld [vmem:[#allocation7 + $0x28] sm:$0xf]
        %v545 = vld [vmem:[#allocation7 + $0x2c] sm:$0xf]
        %v546 = vld [vmem:[#allocation7 + $0x30] sm:$0xf]
        %v547 = vld [vmem:[#allocation7 + $0x34] sm:$0xf]
        %v548 = vld [vmem:[#allocation7 + $0x38] sm:$0xf]
        %v549 = vld [vmem:[#allocation7 + $0x3c] sm:$0xf]
        %v551 = vperm.slane %v313, 0
        %v569 = vunpack.c.l.b16 %v534
        %v570 = vunpack.c.l.b16 %v535
        %v571 = vunpack.c.l.b16 %v536
        %v572 = vunpack.c.l.b16 %v537
        %v573 = vunpack.c.l.b16 %v538
        %v574 = vunpack.c.l.b16 %v539
        %v575 = vunpack.c.l.b16 %v540
        %v576 = vunpack.c.l.b16 %v541
        %v577 = vunpack.c.l.b16 %v542
        %v578 = vunpack.c.l.b16 %v543
        %v579 = vunpack.c.l.b16 %v544
        %v580 = vunpack.c.l.b16 %v545
        %v581 = vunpack.c.l.b16 %v546
        %v582 = vunpack.c.l.b16 %v547
        %v583 = vunpack.c.l.b16 %v548
        %v584 = vunpack.c.l.b16 %v549
        %v585 = vpack.c.b16 %v570, %v569
        %v586 = vpack.c.b16 %v572, %v571
        %v587 = vpack.c.b16 %v574, %v573
        %v588 = vpack.c.b16 %v576, %v575
        %v589 = vpack.c.b16 %v578, %v577
        %v590 = vpack.c.b16 %v580, %v579
        %v591 = vpack.c.b16 %v582, %v581
        %v592 = vpack.c.b16 %v584, %v583
        %601 = vmatpush.bf16.msra.mxu0 %v592
        %602 = vmatpush.bf16.msra.mxu0 %v591
        %603 = vmatpush.bf16.msra.mxu0 %v590
        %604 = vmatpush.bf16.msra.mxu0 %v589
        %605 = vmatpush.bf16.msra.mxu0 %v588
        %606 = vmatpush.bf16.msra.mxu0 %v587
        %607 = vmatpush.bf16.msra.mxu0 %v586
        %608 = vmatpush.bf16.msra.mxu0 %v585
        %609 = vmatmul.bf16.gmra.mxu0 %v518
        %v610 = vpop.f32.mrf.mxu0
        %v611 = vadd.f32 %v551, %v610
        %v612 = vpop.f32.mrf.mxu0
        %v613 = vadd.f32 %v551, %v612
        %614 = vmatmul.bf16.gmra.mxu0 %v519
        %v615 = vpop.f32.mrf.mxu0
        %v616 = vadd.f32 %v551, %v615
        %v617 = vpop.f32.mrf.mxu0
        %v618 = vadd.f32 %v551, %v617
        %619 = vmatmul.bf16.gmra.mxu0 %v520
        %v620 = vpop.f32.mrf.mxu0
        %v621 = vadd.f32 %v551, %v620
        %v622 = vpop.f32.mrf.mxu0
        %v623 = vadd.f32 %v551, %v622
        %624 = vmatmul.bf16.gmra.mxu0 %v521
        %v625 = vpop.f32.mrf.mxu0
        %v626 = vadd.f32 %v551, %v625
        %v627 = vpop.f32.mrf.mxu0
        %v628 = vadd.f32 %v551, %v627
        %629 = vmatmul.bf16.gmra.mxu0 %v522
        %v630 = vpop.f32.mrf.mxu0
        %v631 = vadd.f32 %v551, %v630
        %v632 = vpop.f32.mrf.mxu0
        %v633 = vadd.f32 %v551, %v632
        %634 = vmatmul.bf16.gmra.mxu0 %v523
        %v635 = vpop.f32.mrf.mxu0
        %v636 = vadd.f32 %v551, %v635
        %v637 = vpop.f32.mrf.mxu0
        %v638 = vadd.f32 %v551, %v637
        %639 = vmatmul.bf16.gmra.mxu0 %v524
        %v640 = vpop.f32.mrf.mxu0
        %v641 = vadd.f32 %v551, %v640
        %v642 = vpop.f32.mrf.mxu0
        %v643 = vadd.f32 %v551, %v642
        %644 = vmatmul.bf16.gmra.mxu0 %v525
        %v645 = vpop.f32.mrf.mxu0
        %v646 = vadd.f32 %v551, %v645
        %v647 = vpop.f32.mrf.mxu0
        %v648 = vadd.f32 %v551, %v647
        %649 = vmatmul.bf16.gmra.mxu0 %v526
        %v650 = vpop.f32.mrf.mxu0
        %v651 = vadd.f32 %v551, %v650
        %v652 = vpop.f32.mrf.mxu0
        %v653 = vadd.f32 %v551, %v652
        %654 = vmatmul.bf16.gmra.mxu0 %v527
        %v655 = vpop.f32.mrf.mxu0
        %v656 = vadd.f32 %v551, %v655
        %v657 = vpop.f32.mrf.mxu0
        %v658 = vadd.f32 %v551, %v657
        %659 = vmatmul.bf16.gmra.mxu0 %v528
        %v660 = vpop.f32.mrf.mxu0
        %v661 = vadd.f32 %v551, %v660
        %v662 = vpop.f32.mrf.mxu0
        %v663 = vadd.f32 %v551, %v662
        %664 = vmatmul.bf16.gmra.mxu0 %v529
        %v665 = vpop.f32.mrf.mxu0
        %v666 = vadd.f32 %v551, %v665
        %v667 = vpop.f32.mrf.mxu0
        %v668 = vadd.f32 %v551, %v667
        %669 = vmatmul.bf16.gmra.mxu0 %v530
        %v670 = vpop.f32.mrf.mxu0
        %v671 = vadd.f32 %v551, %v670
        %v672 = vpop.f32.mrf.mxu0
        %v673 = vadd.f32 %v551, %v672
        %674 = vmatmul.bf16.gmra.mxu0 %v531
        %v675 = vpop.f32.mrf.mxu0
        %v676 = vadd.f32 %v551, %v675
        %v677 = vpop.f32.mrf.mxu0
        %v678 = vadd.f32 %v551, %v677
        %679 = vmatmul.bf16.gmra.mxu0 %v532
        %v680 = vpop.f32.mrf.mxu0
        %v681 = vadd.f32 %v551, %v680
        %v682 = vpop.f32.mrf.mxu0
        %v683 = vadd.f32 %v551, %v682
        %684 = vmatmul.bf16.gmra.mxu0 %v533
        %v685 = vpop.f32.mrf.mxu0
        %v686 = vadd.f32 %v551, %v685
        %v687 = vpop.f32.mrf.mxu0
        %v688 = vadd.f32 %v551, %v687
        %689 = vdwg.mxu0
        %v690 = vadd.f32 %v611, %v280
        %v691 = vadd.f32 %v613, %v281
        %v692 = vadd.f32 %v616, %v282
        %v693 = vadd.f32 %v618, %v283
        %v694 = vadd.f32 %v621, %v284
        %v695 = vadd.f32 %v623, %v285
        %v696 = vadd.f32 %v626, %v286
        %v697 = vadd.f32 %v628, %v287
        %v698 = vadd.f32 %v631, %v288
        %v699 = vadd.f32 %v633, %v289
        %v700 = vadd.f32 %v636, %v290
        %v701 = vadd.f32 %v638, %v291
        %v702 = vadd.f32 %v641, %v292
        %v703 = vadd.f32 %v643, %v293
        %v704 = vadd.f32 %v646, %v294
        %v705 = vadd.f32 %v648, %v295
        %v706 = vadd.f32 %v651, %v296
        %v707 = vadd.f32 %v653, %v297
        %v708 = vadd.f32 %v656, %v298
        %v709 = vadd.f32 %v658, %v299
        %v710 = vadd.f32 %v661, %v300
        %v711 = vadd.f32 %v663, %v301
        %v712 = vadd.f32 %v666, %v302
        %v713 = vadd.f32 %v668, %v303
        %v714 = vadd.f32 %v671, %v304
        %v715 = vadd.f32 %v673, %v305
        %v716 = vadd.f32 %v676, %v306
        %v717 = vadd.f32 %v678, %v307
        %v718 = vadd.f32 %v681, %v308
        %v719 = vadd.f32 %v683, %v309
        %v720 = vadd.f32 %v686, %v310
        %v721 = vadd.f32 %v688, %v311
        %722 = vst [vmem:[%s277] sm:$0xff] %v690
        %723 = vst [vmem:[%s277 + $0x8] sm:$0xff] %v691
        %724 = vst [vmem:[%s277 + $0x10] sm:$0xff] %v692
        %725 = vst [vmem:[%s277 + $0x18] sm:$0xff] %v693
        %726 = vst [vmem:[%s277 + $0x20] sm:$0xff] %v694
        %727 = vst [vmem:[%s277 + $0x28] sm:$0xff] %v695
        %728 = vst [vmem:[%s277 + $0x30] sm:$0xff] %v696
        %729 = vst [vmem:[%s277 + $0x38] sm:$0xff] %v697
        %730 = vst [vmem:[%s277 + $0x40] sm:$0xff] %v698
        %731 = vst [vmem:[%s277 + $0x48] sm:$0xff] %v699
        %732 = vst [vmem:[%s277 + $0x50] sm:$0xff] %v700
        %733 = vst [vmem:[%s277 + $0x58] sm:$0xff] %v701
        %734 = vst [vmem:[%s277 + $0x60] sm:$0xff] %v702
        %735 = vst [vmem:[%s277 + $0x68] sm:$0xff] %v703
        %736 = vst [vmem:[%s277 + $0x70] sm:$0xff] %v704
        %737 = vst [vmem:[%s277 + $0x78] sm:$0xff] %v705
        %738 = vst [vmem:[%s277 + $0x80] sm:$0xff] %v706
        %739 = vst [vmem:[%s277 + $0x88] sm:$0xff] %v707
        %740 = vst [vmem:[%s277 + $0x90] sm:$0xff] %v708
        %741 = vst [vmem:[%s277 + $0x98] sm:$0xff] %v709
        %742 = vst [vmem:[%s277 + $0xa0] sm:$0xff] %v710
        %743 = vst [vmem:[%s277 + $0xa8] sm:$0xff] %v711
        %744 = vst [vmem:[%s277 + $0xb0] sm:$0xff] %v712
        %745 = vst [vmem:[%s277 + $0xb8] sm:$0xff] %v713
        %746 = vst [vmem:[%s277 + $0xc0] sm:$0xff] %v714
        %747 = vst [vmem:[%s277 + $0xc8] sm:$0xff] %v715
        %748 = vst [vmem:[%s277 + $0xd0] sm:$0xff] %v716
        %749 = vst [vmem:[%s277 + $0xd8] sm:$0xff] %v717
        %750 = vst [vmem:[%s277 + $0xe0] sm:$0xff] %v718
        %751 = vst [vmem:[%s277 + $0xe8] sm:$0xff] %v719
        %752 = vst [vmem:[%s277 + $0xf0] sm:$0xff] %v720
        %753 = vst [vmem:[%s277 + $0xf8] sm:$0xff] %v721
        %s754 = sand.u32 %s141, 1
        %s755 = scalar_lea.sflag [#allocation4], %s754
        %s756 = sand.u32 %s141, 1
        %s757 = smul.addr %s756, 256
        %s758 = scalar_lea.vmem [#allocation8], %s757
        // Predicated region
        $region53: #{tpu_custom_call.1} parent=39 // pred_check
          %p759 = pneg %p151
        $region54: #{tpu_custom_call.1} parent=39 // pred_check_branch
          %761 = sbr.rel (%p759) target = $region56
        $region55: #{tpu_custom_call.1} parent=39 // pred_region
          %s762 = smul.u32 32, %s23
          %764 = vsyncadd %s755, 0
          %s765 = smul.addr %s762, 8
          %s766 = scalar_lea.hbm %s5, %s765
          %s767 = sshll.u32 %s758, 4
          %s768 = int_to_ptr.vmem [resolvable:$true] %s767
          %s769 = sshll.u32 %s766, 4
          %s770 = int_to_ptr.hbm [resolvable:$true] %s769
          %775 = dma.vmem_to_hbm [thread:$0]  %s768, 4096, %s770, %s755, 128, 128, 8
        $region56: #{tpu_custom_call.1} parent=39 // pred_fallthru
          _
      $region40: #{tpu_custom_call.1} parent=5 // pred_fallthru
        _
      %p776 = scmp.le.s32.totalorder 2, %s18
      // Predicated region
      $region57: #{tpu_custom_call.1} parent=5 // pred_check
        %p777 = pneg %p776
      $region58: #{tpu_custom_call.1} parent=5 // pred_check_branch
        %779 = sbr.rel (%p777) target = $region60
      $region59: #{tpu_custom_call.1} parent=5 // pred_region
        %s780 = ssub.s32 %s18, 2
        // Predicated region
        $region61: #{tpu_custom_call.1} parent=59 // pred_check
          %p781 = pneg %p157
        $region62: #{tpu_custom_call.1} parent=59 // pred_check_branch
          %783 = sbr.rel (%p781) target = $region64
        $region63: #{tpu_custom_call.1} parent=59 // pred_region
          %s784 = sand.u32 %s142, 1
          %s785 = scalar_lea.sflag [#allocation4], %s784
          %s786 = sand.u32 %s142, 1
          %s787 = smul.addr %s786, 256
          %s788 = scalar_lea.vmem [#allocation8], %s787
          %790 = dma.done %s785, 4096
        $region64: #{tpu_custom_call.1} parent=59 // pred_fallthru
          _
      $region60: #{tpu_custom_call.1} parent=5 // pred_fallthru
        _
    $region6: #{tpu_custom_call.1} parent=1 // loop_footer
      %s22 = sadd.s32 1, %s18
    $region7: #{tpu_custom_call.1} parent=1 // loop_footer_branch
      %17 = sbr.rel target = $region3
    $region8: #{tpu_custom_call.1} parent=1 // loop_exit
      _
    %791 = vsyncpa [#allocation3], 1
    %s792 = scalar_lea.sflag [#allocation3], 1
    %793 = vsyncpa %s792, 1
    %794 = vsyncpa [#allocation6], 1
    %795 = vsyncpa [#allocation4], 1
    %s796 = scalar_lea.sflag [#allocation4], 1
    %797 = vsyncpa %s796, 1

</llo_original>
